<compile_context>
chip_gen: v7x
topology: tpu7x:2x2x1
jax: 0.10.0
libtpu: 0.0.40
codegen_flags: <defaults>
</compile_context>

<pallas_src>
import functools

import jax
import jax.numpy as jnp
from jax.experimental import pallas as pl
from jax.experimental.pallas import tpu as pltpu

IN_FEATURES = 150
HIDDEN = 512
HEAD_PAD = 128          # fused (value | advantage) head width, lane-dense
FAST_PATH_MAX_B = 512   # single-kernel path for typical DQN batch sizes


def _round_up(n, m):
    return ((n + m - 1) // m) * m


# --------------------------------------------------------------------------- #
# Kernel A (fast path, B <= FAST_PATH_MAX_B, whole batch in one tile):
# shared layer + fused heads + GLOBAL advantage mean + dueling combine.
# out[:, c] = heads[:, c] + value - mean ; wrapper keeps cols 1..A only.
# --------------------------------------------------------------------------- #
def fused_dueling_kernel(x_ref, w1_ref, b1_ref, wh_ref, bh_ref, out_ref,
                         *, batch, num_actions):
    h = jnp.dot(x_ref[...], w1_ref[...], preferred_element_type=jnp.float32)
    h = jnp.maximum(h + b1_ref[...], 0.0)              # bias + ReLU in f32 (v5e-safe)
    h = h.astype(wh_ref.dtype)                          # back to MXU operand dtype
    heads = jnp.dot(h, wh_ref[...],
                    preferred_element_type=jnp.float32) + bh_ref[...]   # (B, 128) f32

    # GLOBAL advantage mean over the true (batch x num_actions) entries.
    col = jax.lax.broadcasted_iota(jnp.int32, heads.shape, 1)
    adv_mask = jnp.logical_and(col >= 1, col < 1 + num_actions)
    adv_sum = jnp.sum(jnp.where(adv_mask, heads, 0.0))
    mean = adv_sum * (1.0 / float(batch * num_actions))  # constant multiply, no divide

    value = heads[:, 0:1]
    out_ref[...] = heads + value - mean                  # lane-dense 128-wide store


# --------------------------------------------------------------------------- #
# Kernel B (large-batch path): per batch tile, shared layer + fused heads only.
# heads[:, 0] = value, heads[:, 1:1+A] = advantage, rest = padded bias (unused).
# The global mean + combine happen in a tiny fused XLA epilogue.
# --------------------------------------------------------------------------- #
def fused_heads_kernel(x_ref, w1_ref, b1_ref, wh_ref, bh_ref, heads_ref):
    h = jnp.dot(x_ref[...], w1_ref[...], preferred_element_type=jnp.float32)
    h = jnp.maximum(h + b1_ref[...], 0.0)
    h = h.astype(wh_ref.dtype)
    heads = jnp.dot(h, wh_ref[...], preferred_element_type=jnp.float32)
    heads_ref[...] = heads + bh_ref[...]


def pack_params(params, compute_dtype=jnp.bfloat16):
    """Fuse the two heads into one lane-dense (512, 128) weight (no K padding)."""
    w1, b1, wv, bv, wa, ba = params
    a = wa.shape[1]
    assert 1 + a <= HEAD_PAD, "num_actions + 1 must fit in one 128-lane tile"
    wh = jnp.zeros((HIDDEN, HEAD_PAD), jnp.float32)
    wh = wh.at[:, 0:1].set(wv).at[:, 1:1 + a].set(wa)
    bh = jnp.zeros((1, HEAD_PAD), jnp.float32)
    bh = bh.at[:, 0:1].set(bv).at[:, 1:1 + a].set(ba)
    # Biases stay f32 (all elementwise math is kept in f32 -> v5e-safe).
    return (w1.astype(compute_dtype),
            b1.astype(jnp.float32).reshape(1, HIDDEN),
            wh.astype(compute_dtype),
            bh)


@functools.partial(jax.jit, static_argnames=("num_actions",))
def orb_ddqn_forward(x, w1, b1, wh, bh, *, num_actions):
    """x: (B, 150) float32. Returns (B, num_actions) float32."""
    B, K = x.shape
    assert K == IN_FEATURES
    A = num_actions
    compute_dtype = w1.dtype
    x_c = x.astype(compute_dtype)   # only a dtype cast; no padded copy of x

    flops = 2 * B * IN_FEATURES * HIDDEN + 2 * B * HIDDEN * HEAD_PAD
    bytes_accessed = (x_c.size * x_c.dtype.itemsize
                      + w1.size * w1.dtype.itemsize + b1.size * 4
                      + wh.size * wh.dtype.itemsize + bh.size * 4
                      + B * HEAD_PAD * 4)
    cost = pl.CostEstimate(flops=flops, transcendentals=0,
                           bytes_accessed=bytes_accessed)

    # ---------------- fast path: one kernel, one dispatch ---------------- #
    if B <= FAST_PATH_MAX_B:
        # TODO(synk): on v7x this single-tile path uses one of the two TCs;
        # acceptable because launch latency dominates at these batch sizes.
        out_full = pl.pallas_call(
            functools.partial(fused_dueling_kernel, batch=B, num_actions=A),
            out_shape=jax.ShapeDtypeStruct((B, HEAD_PAD), jnp.float32),
            cost_estimate=cost,
        )(x_c, w1, b1, wh, bh)
        # Keep kernel stores lane-dense; strip the fused-head padding here.
        return out_full[:, 1:1 + A]

    # --------------- large-batch path: tiled heads + XLA combine --------- #
    # >= 2 tiles so the "parallel" grid axis can shard across v7x's 2 TCs;
    # TB capped at 1024 rows (amortizes ~0.35us per-grid-step overhead).
    TB = min(1024, _round_up(pl.cdiv(B, 2), 8))
    n_tiles = pl.cdiv(B, TB)   # ragged last tile OK: OOB rows are masked off

    heads = pl.pallas_call(
        fused_heads_kernel,
        out_shape=jax.ShapeDtypeStruct((B, HEAD_PAD), jnp.float32),
        grid=(n_tiles,),
        in_specs=[
            pl.BlockSpec((TB, IN_FEATURES), lambda i: (i, 0)),      # x tile
            pl.BlockSpec((IN_FEATURES, HIDDEN), lambda i: (0, 0)),  # W1 (resident)
            pl.BlockSpec((1, HIDDEN), lambda i: (0, 0)),            # b1 (resident)
            pl.BlockSpec((HIDDEN, HEAD_PAD), lambda i: (0, 0)),     # fused head W
            pl.BlockSpec((1, HEAD_PAD), lambda i: (0, 0)),          # fused head b
        ],
        out_specs=pl.BlockSpec((TB, HEAD_PAD), lambda i: (i, 0)),
        compiler_params=pltpu.CompilerParams(
            dimension_semantics=("parallel",),
            vmem_limit_bytes=32 << 20),     # v5e scoped-VMEM guard for big TB
        cost_estimate=cost,
    )(x_c, w1, b1, wh, bh)

    # Dueling combine in plain XLA (fuses with the slice; tiny elementwise).
    value = heads[:, 0:1]
    adv = heads[:, 1:1 + A]
    mean = jnp.sum(adv, dtype=jnp.float32) * (1.0 / float(B * A))
    return value + adv - mean


def init_params(key, num_actions):
    """Mimics PyTorch's default Linear init (U[-1/sqrt(fan_in), +1/sqrt(fan_in)])."""
    ks = jax.random.split(key, 6)

    def lin(kw, kb, fan_in, fan_out):
        bound = 1.0 / jnp.sqrt(fan_in)
        w = jax.random.uniform(kw, (fan_in, fan_out), jnp.float32, -bound, bound)
        b = jax.random.uniform(kb, (1, fan_out), jnp.float32, -bound, bound)
        return w, b

    w1, b1 = lin(ks[0], ks[1], IN_FEATURES, HIDDEN)
    wv, bv = lin(ks[2], ks[3], HIDDEN, 1)
    wa, ba = lin(ks[4], ks[5], HIDDEN, num_actions)
    return (w1, b1, wv, bv, wa, ba)


def reference_forward(x, params):
    """Pure-JAX reference (matches the PyTorch module exactly)."""
    w1, b1, wv, bv, wa, ba = params
    h = jnp.maximum(x @ w1 + b1, 0.0)
    value = h @ wv + bv
    adv = h @ wa + ba
    return value + adv - jnp.mean(adv)


if __name__ == "__main__":
    num_actions = 8
    key = jax.random.PRNGKey(0)
    k_x, k_p, k_x2 = jax.random.split(key, 3)
    params = init_params(k_p, num_actions)

    # ---- fast path (typical DQN batch), f32 operands: tight tolerance ----
    batch = 2
    x = jax.random.normal(k_x, (batch, IN_FEATURES), dtype=jnp.float32)
    ref = reference_forward(x, params)

    w1f, b1f, whf, bhf = pack_params(params, compute_dtype=jnp.float32)
    out = jax.block_until_ready(
        orb_ddqn_forward(x, w1f, b1f, whf, bhf, num_actions=num_actions))
    assert out.shape == (batch, num_actions)
    assert jnp.allclose(out, ref, atol=1e-3, rtol=1e-3), "fast-path f32 mismatch"

    # ---- fast path, bf16 MXU operands (default): looser tolerance --------
    w1h, b1h, whh, bhh = pack_params(params)          # default bf16
    out16 = jax.block_until_ready(
        orb_ddqn_forward(x, w1h, b1h, whh, bhh, num_actions=num_actions))
    assert out16.shape == (batch, num_actions)
    assert jnp.allclose(out16, ref, atol=5e-2, rtol=5e-2), "fast-path bf16 mismatch"

    # ---- large-batch tiled path (exercises ragged last tile), f32 --------
    big_batch = 1030
    xb = jax.random.normal(k_x2, (big_batch, IN_FEATURES), dtype=jnp.float32)
    refb = reference_forward(xb, params)
    outb = jax.block_until_ready(
        orb_ddqn_forward(xb, w1f, b1f, whf, bhf, num_actions=num_actions))
    assert outb.shape == (big_batch, num_actions)
    assert jnp.allclose(outb, refb, atol=1e-3, rtol=1e-3), "tiled-path f32 mismatch"

    print("KERNEL_OK")
</pallas_src>

<mosaic_0001>
module attributes {stable_mosaic.version = 11 : i64} {
  func.func @fused_dueling_kernel(%arg0: memref<2x150xf32, #tpu.memory_space<vmem>>, %arg1: memref<150x512xf32, #tpu.memory_space<vmem>>, %arg2: memref<1x512xf32, #tpu.memory_space<vmem>>, %arg3: memref<512x128xf32, #tpu.memory_space<vmem>>, %arg4: memref<1x128xf32, #tpu.memory_space<vmem>>, %arg5: memref<2x128xf32, #tpu.memory_space<vmem>>) attributes {dimension_semantics = [], scalar_prefetch = 0 : i64, scratch_operands = 0 : i64, tpu.core_type = #tpu.core_type<tc>} {
    %c0 = arith.constant 0 : index
    %c0_0 = arith.constant 0 : index
    %0 = vector.load %arg0[%c0, %c0_0] : memref<2x150xf32, #tpu.memory_space<vmem>>, vector<2x150xf32>
    %c0_1 = arith.constant 0 : index
    %c0_2 = arith.constant 0 : index
    %1 = vector.load %arg1[%c0_1, %c0_2] : memref<150x512xf32, #tpu.memory_space<vmem>>, vector<150x512xf32>
    %cst = arith.constant dense<0.000000e+00> : vector<2x512xf32>
    %2 = tpu.matmul %0, %1, %cst {dimension_numbers = #tpu.dot_dimension_numbers<[1], [0], [0], [1], [0, 0, 1, 1], [], []>} : vector<2x150xf32>, vector<150x512xf32>, vector<2x512xf32> -> vector<2x512xf32>
    %c0_3 = arith.constant 0 : index
    %c0_4 = arith.constant 0 : index
    %3 = vector.load %arg2[%c0_3, %c0_4] : memref<1x512xf32, #tpu.memory_space<vmem>>, vector<1x512xf32>
    %4 = vector.broadcast %3 : vector<1x512xf32> to vector<2x512xf32>
    %5 = arith.addf %2, %4 : vector<2x512xf32>
    %cst_5 = arith.constant 0.000000e+00 : f32
    %6 = vector.broadcast %cst_5 : f32 to vector<2x512xf32>
    %7 = arith.maximumf %5, %6 : vector<2x512xf32>
    %c0_6 = arith.constant 0 : index
    %c0_7 = arith.constant 0 : index
    %8 = vector.load %arg3[%c0_6, %c0_7] : memref<512x128xf32, #tpu.memory_space<vmem>>, vector<512x128xf32>
    %cst_8 = arith.constant dense<0.000000e+00> : vector<2x128xf32>
    %9 = tpu.matmul %7, %8, %cst_8 {dimension_numbers = #tpu.dot_dimension_numbers<[1], [0], [0], [1], [0, 0, 1, 1], [], []>} : vector<2x512xf32>, vector<512x128xf32>, vector<2x128xf32> -> vector<2x128xf32>
    %c0_9 = arith.constant 0 : index
    %c0_10 = arith.constant 0 : index
    %10 = vector.load %arg4[%c0_9, %c0_10] : memref<1x128xf32, #tpu.memory_space<vmem>>, vector<1x128xf32>
    %11 = vector.broadcast %10 : vector<1x128xf32> to vector<2x128xf32>
    %12 = arith.addf %9, %11 : vector<2x128xf32>
    %13 = tpu.iota {dimensions = array<i32: 1>} : vector<2x128xi32>
    %c1_i32 = arith.constant 1 : i32
    %14 = vector.broadcast %c1_i32 : i32 to vector<2x128xi32>
    %15 = arith.cmpi sge, %13, %14 : vector<2x128xi32>
    %c9_i32 = arith.constant 9 : i32
    %16 = vector.broadcast %c9_i32 : i32 to vector<2x128xi32>
    %17 = arith.cmpi slt, %13, %16 : vector<2x128xi32>
    %18 = arith.andi %15, %17 : vector<2x128xi1>
    %cst_11 = arith.constant 0.000000e+00 : f32
    %19 = vector.broadcast %cst_11 : f32 to vector<2x128xf32>
    %20 = arith.select %18, %12, %19 : vector<2x128xi1>, vector<2x128xf32>
    %21 = vector.shape_cast %20 : vector<2x128xf32> to vector<1x2x128xf32>
    %cst_12 = arith.constant dense<0.000000e+00> : vector<1xf32>
    %22 = vector.multi_reduction <add>, %21, %cst_12 [1, 2] : vector<1x2x128xf32> to vector<1xf32>
    %23 = vector.shape_cast %22 : vector<1xf32> to vector<1x1x1xf32>
    %24 = vector.extract %23[0, 0, 0] : f32 from vector<1x1x1xf32>
    %cst_13 = arith.constant 6.250000e-02 : f32
    %25 = arith.mulf %24, %cst_13 : f32
    %26 = vector.extract_strided_slice %12 {offsets = [0, 0], sizes = [2, 1], strides = [1, 1]} : vector<2x128xf32> to vector<2x1xf32>
    %27 = vector.broadcast %26 : vector<2x1xf32> to vector<2x128xf32>
    %28 = arith.addf %12, %27 : vector<2x128xf32>
    %29 = vector.broadcast %25 : f32 to vector<2x128xf32>
    %30 = arith.subf %28, %29 : vector<2x128xf32>
    %c0_14 = arith.constant 0 : index
    %c0_15 = arith.constant 0 : index
    %31 = vector.load %arg5[%c0_14, %c0_15] : memref<2x128xf32, #tpu.memory_space<vmem>>, vector<2x128xf32>
    tpu.vector_store %arg5[%c0_14, %c0_15], %30 {strides = array<i32>} : memref<2x128xf32, #tpu.memory_space<vmem>>, vector<2x128xf32>,
    return
  }
}

</mosaic_0001>

<llo_original>
// kernel: orb_ddqn_forward.1
$region0: #{orb_ddqn_forward.1}
  #allocation0 [shape = 'u32[]', space=smem, size = 0x4, offset = 0x4, fixed_abs, tag = 'smem constant byte address 0x4 - core index']
  #allocation1 [shape = 'u32[144,128]{1,0:T(1,128)}', space=vmem, size = 0x12000, scoped, tag = 'internal scratch']
  %s0 = inlined_call_operand.hbm [shape: f32[2,150], index: 0, kind: input, shape index: {}]
  %s1 = inlined_call_operand.hbm [shape: f32[150,512], index: 1, kind: input, shape index: {}]
  %s2 = inlined_call_operand.vmem [shape: f32[1,512], index: 2, kind: input, shape index: {}]
  %s3 = inlined_call_operand.hbm [shape: f32[512,128], index: 3, kind: input, shape index: {}]
  %s4 = inlined_call_operand.vmem [shape: f32[1,128], index: 4, kind: input, shape index: {}]
  %s5 = inlined_call_operand.vmem [shape: f32[2,128], index: 5, kind: output, shape index: {}]
  %s6 = sld [smem:[#allocation0]]
  $region42: #{orb_ddqn_forward.1} parent=0
    _
  %s8 = ssub.s32 1, %s6
  %s9 = scalar_select 0, %s8, %s6
  $region1: #{orb_ddqn_forward.1} parent=0
    #allocation2 [shape = 'u8[2048]{0}', space=vmem, size = 0x800, scoped, tag = 'input window, operand 0, single buffered']
    #allocation3 [shape = 's32[1]{0}', space=sflag, size = 0x4, scoped, tag = 'scoped memory for orb_ddqn_forward.1']
    #allocation4 [shape = 'u8[311296]{0}', space=vmem, size = 0x4c000, scoped, tag = 'input window, operand 1, single buffered']
    #allocation5 [shape = 's32[1]{0}', space=sflag, size = 0x4, scoped, tag = 'scoped memory for orb_ddqn_forward.1']
    #allocation6 [shape = 'u8[262144]{0}', space=vmem, size = 0x40000, scoped, tag = 'input window, operand 3, single buffered']
    %10 = vsyncpa [#allocation3], 0
    %11 = vsyncpa [#allocation5], 0
    // Predicated region
    $region2: #{orb_ddqn_forward.1} parent=1 // pred_check
      _
    $region3: #{orb_ddqn_forward.1} parent=1 // pred_check_branch
      %13 = sbr.rel (0) target = $region5
    $region4: #{orb_ddqn_forward.1} parent=1 // pred_region
      %s15 = ssub.s32 64, 64
      %16 = vsyncadd [#allocation3], %s15
      %s18 = sshll.u32 [#allocation2], 4
      %s19 = int_to_ptr.vmem [resolvable:$true] %s18
      %21 = dma.hbm_to_vmem [thread:$0]  %s0, 64, %s19, [#allocation3]
    $region5: #{orb_ddqn_forward.1} parent=1 // pred_fallthru
      _
    // Predicated region
    $region6: #{orb_ddqn_forward.1} parent=1 // pred_check
      _
    $region7: #{orb_ddqn_forward.1} parent=1 // pred_check_branch
      %23 = sbr.rel (0) target = $region9
    $region8: #{orb_ddqn_forward.1} parent=1 // pred_region
      %s25 = ssub.s32 9728, 9728
      %26 = vsyncadd [#allocation5], %s25
      %s27 = sshll.u32 [#allocation4], 4
      %s28 = int_to_ptr.vmem [resolvable:$true] %s27
      %33 = dma.hbm_to_vmem [thread:$0]  %s1, 9728, %s28, [#allocation5], 512, 512, 32
    $region9: #{orb_ddqn_forward.1} parent=1 // pred_fallthru
      _
    // Predicated region
    $region10: #{orb_ddqn_forward.1} parent=1 // pred_check
      _
    $region11: #{orb_ddqn_forward.1} parent=1 // pred_check_branch
      %35 = sbr.rel (0) target = $region13
    $region12: #{orb_ddqn_forward.1} parent=1 // pred_region
      _
    $region13: #{orb_ddqn_forward.1} parent=1 // pred_fallthru
      _
    // Predicated region
    $region14: #{orb_ddqn_forward.1} parent=1 // pred_check
      _
    $region15: #{orb_ddqn_forward.1} parent=1 // pred_check_branch
      %37 = sbr.rel (0) target = $region17
    $region16: #{orb_ddqn_forward.1} parent=1 // pred_region
      %s39 = ssub.s32 8192, 8192
      %40 = vsyncadd [#allocation5], %s39
      %s41 = sshll.u32 [#allocation6], 4
      %s42 = int_to_ptr.vmem [resolvable:$true] %s41
      %47 = dma.hbm_to_vmem [thread:$0]  %s3, 8192, %s42, [#allocation5], 128, 128, 8
    $region17: #{orb_ddqn_forward.1} parent=1 // pred_fallthru
      _
    // Predicated region
    $region18: #{orb_ddqn_forward.1} parent=1 // pred_check
      _
    $region19: #{orb_ddqn_forward.1} parent=1 // pred_check_branch
      %49 = sbr.rel (0) target = $region21
    $region20: #{orb_ddqn_forward.1} parent=1 // pred_region
      _
    $region21: #{orb_ddqn_forward.1} parent=1 // pred_fallthru
      _
    // Predicated region
    $region22: #{orb_ddqn_forward.1} parent=1 // pred_check
      _
    $region23: #{orb_ddqn_forward.1} parent=1 // pred_check_branch
      %51 = sbr.rel (0) target = $region25
    $region24: #{orb_ddqn_forward.1} parent=1 // pred_region
      %52 = dma.done [#allocation3], 64
    $region25: #{orb_ddqn_forward.1} parent=1 // pred_fallthru
      _
    // Predicated region
    $region26: #{orb_ddqn_forward.1} parent=1 // pred_check
      _
    $region27: #{orb_ddqn_forward.1} parent=1 // pred_check_branch
      %54 = sbr.rel (0) target = $region29
    $region28: #{orb_ddqn_forward.1} parent=1 // pred_region
      %55 = dma.done [#allocation5], 9728
    $region29: #{orb_ddqn_forward.1} parent=1 // pred_fallthru
      _
    // Predicated region
    $region30: #{orb_ddqn_forward.1} parent=1 // pred_check
      _
    $region31: #{orb_ddqn_forward.1} parent=1 // pred_check_branch
      %57 = sbr.rel (0) target = $region33
    $region32: #{orb_ddqn_forward.1} parent=1 // pred_region
      %58 = dma.done [#allocation5], 8192
    $region33: #{orb_ddqn_forward.1} parent=1 // pred_fallthru
      _
    %v59 = vld [vmem:[#allocation2] sm:$0xf]
    %v60 = vld [vmem:[#allocation4] sm:$0xff]
    %v61 = vld [vmem:[#allocation4 + $0x8] sm:$0xff]
    %v62 = vld [vmem:[#allocation4 + $0x10] sm:$0xff]
    %v63 = vld [vmem:[#allocation4 + $0x18] sm:$0xff]
    %v64 = vld [vmem:[#allocation4 + $0x20] sm:$0xff]
    %v65 = vld [vmem:[#allocation4 + $0x28] sm:$0xff]
    %v66 = vld [vmem:[#allocation4 + $0x30] sm:$0xff]
    %v67 = vld [vmem:[#allocation4 + $0x38] sm:$0xff]
    %v68 = vld [vmem:[#allocation4 + $0x40] sm:$0xff]
    %v69 = vld [vmem:[#allocation4 + $0x48] sm:$0xff]
    %v70 = vld [vmem:[#allocation4 + $0x50] sm:$0xff]
    %v71 = vld [vmem:[#allocation4 + $0x58] sm:$0xff]
    %v72 = vld [vmem:[#allocation4 + $0x60] sm:$0xff]
    %v73 = vld [vmem:[#allocation4 + $0x68] sm:$0xff]
    %v74 = vld [vmem:[#allocation4 + $0x70] sm:$0xff]
    %v75 = vld [vmem:[#allocation4 + $0x78] sm:$0xff]
    %v76 = vld [vmem:[#allocation4 + $0x80] sm:$0xff]
    %v77 = vld [vmem:[#allocation4 + $0x88] sm:$0xff]
    %v78 = vld [vmem:[#allocation4 + $0x90] sm:$0xff]
    %v79 = vld [vmem:[#allocation4 + $0x98] sm:$0xff]
    %v80 = vld [vmem:[#allocation4 + $0xa0] sm:$0xff]
    %v81 = vld [vmem:[#allocation4 + $0xa8] sm:$0xff]
    %v82 = vld [vmem:[#allocation4 + $0xb0] sm:$0xff]
    %v83 = vld [vmem:[#allocation4 + $0xb8] sm:$0xff]
    %v84 = vld [vmem:[#allocation4 + $0xc0] sm:$0xff]
    %v85 = vld [vmem:[#allocation4 + $0xc8] sm:$0xff]
    %v86 = vld [vmem:[#allocation4 + $0xd0] sm:$0xff]
    %v87 = vld [vmem:[#allocation4 + $0xd8] sm:$0xff]
    %v88 = vld [vmem:[#allocation4 + $0xe0] sm:$0xff]
    %v89 = vld [vmem:[#allocation4 + $0xe8] sm:$0xff]
    %v90 = vld [vmem:[#allocation4 + $0xf0] sm:$0xff]
    %v91 = vld [vmem:[#allocation4 + $0xf8] sm:$0xff]
    %v92 = vld [vmem:[#allocation4 + $0x100] sm:$0xff]
    %v93 = vld [vmem:[#allocation4 + $0x108] sm:$0xff]
    %v94 = vld [vmem:[#allocation4 + $0x110] sm:$0xff]
    %v95 = vld [vmem:[#allocation4 + $0x118] sm:$0xff]
    %v96 = vld [vmem:[#allocation4 + $0x120] sm:$0xff]
    %v97 = vld [vmem:[#allocation4 + $0x128] sm:$0xff]
    %v98 = vld [vmem:[#allocation4 + $0x130] sm:$0xff]
    %v99 = vld [vmem:[#allocation4 + $0x138] sm:$0xff]
    %v100 = vld [vmem:[#allocation4 + $0x140] sm:$0xff]
    %v101 = vld [vmem:[#allocation4 + $0x148] sm:$0xff]
    %v102 = vld [vmem:[#allocation4 + $0x150] sm:$0xff]
    %v103 = vld [vmem:[#allocation4 + $0x158] sm:$0xff]
    %v104 = vld [vmem:[#allocation4 + $0x160] sm:$0xff]
    %v105 = vld [vmem:[#allocation4 + $0x168] sm:$0xff]
    %v106 = vld [vmem:[#allocation4 + $0x170] sm:$0xff]
    %v107 = vld [vmem:[#allocation4 + $0x178] sm:$0xff]
    %v108 = vld [vmem:[#allocation4 + $0x180] sm:$0xff]
    %v109 = vld [vmem:[#allocation4 + $0x188] sm:$0xff]
    %v110 = vld [vmem:[#allocation4 + $0x190] sm:$0xff]
    %v111 = vld [vmem:[#allocation4 + $0x198] sm:$0xff]
    %v112 = vld [vmem:[#allocation4 + $0x1a0] sm:$0xff]
    %v113 = vld [vmem:[#allocation4 + $0x1a8] sm:$0xff]
    %v114 = vld [vmem:[#allocation4 + $0x1b0] sm:$0xff]
    %v115 = vld [vmem:[#allocation4 + $0x1b8] sm:$0xff]
    %v116 = vld [vmem:[#allocation4 + $0x1c0] sm:$0xff]
    %v117 = vld [vmem:[#allocation4 + $0x1c8] sm:$0xff]
    %v118 = vld [vmem:[#allocation4 + $0x1d0] sm:$0xff]
    %v119 = vld [vmem:[#allocation4 + $0x1d8] sm:$0xff]
    %v120 = vld [vmem:[#allocation4 + $0x1e0] sm:$0xff]
    %v121 = vld [vmem:[#allocation4 + $0x1e8] sm:$0xff]
    %v122 = vld [vmem:[#allocation4 + $0x1f0] sm:$0xff]
    %v123 = vld [vmem:[#allocation4 + $0x1f8] sm:$0xff]
    %v124 = vld [vmem:[#allocation4 + $0x200] sm:$0xff]
    %v125 = vld [vmem:[#allocation4 + $0x208] sm:$0xff]
    %v126 = vld [vmem:[#allocation4 + $0x210] sm:$0xff]
    %v127 = vld [vmem:[#allocation4 + $0x218] sm:$0xff]
    %v128 = vld [vmem:[#allocation4 + $0x220] sm:$0xff]
    %v129 = vld [vmem:[#allocation4 + $0x228] sm:$0xff]
    %v130 = vld [vmem:[#allocation4 + $0x230] sm:$0xff]
    %v131 = vld [vmem:[#allocation4 + $0x238] sm:$0xff]
    %v132 = vld [vmem:[#allocation4 + $0x240] sm:$0x3f]
    %v133 = vld [vmem:[#allocation4 + $0x248] sm:$0x3f]
    %v134 = vld [vmem:[#allocation4 + $0x250] sm:$0x3f]
    %v135 = vld [vmem:[#allocation4 + $0x258] sm:$0x3f]
    %v136 = vld [vmem:[%s2] sm:$0xf]
    %v138 = vlaneseq
    %v139 = vshrl.u32 %v138, 7
    %v140 = vsub.s32 0, %v139
    %v141 = vrot.slane %v136, %v140
    %v142 = vlaneseq
    %v143 = vshrl.u32 %v142, 7
    %v144 = vsub.s32 1, %v143
    %v145 = vrot.slane %v136, %v144
    %v146 = vlaneseq
    %v147 = vshrl.u32 %v146, 7
    %v148 = vsub.s32 2, %v147
    %v149 = vrot.slane %v136, %v148
    %v150 = vlaneseq
    %v151 = vshrl.u32 %v150, 7
    %v152 = vsub.s32 3, %v151
    %v153 = vrot.slane %v136, %v152
    %v160 = vunpack.c.l.s4 1983009808
    %v161 = vunpack.c.0.s8 %v160
    %v162 = vlaneseq
    %v163 = vshrl.u32 %v162, 7
    %v164 = vsub.s32 %v161, %v163
    %v165 = vrot.slane %v59, %v164
    %v166 = vcombine.high %v165, %v165
    %vm168 = vcmask 179200
    %v169 = vsel %vm168, %v166, 0
    %vm171 = vcmask 1045504
    %v173 = vsel %vm171, %v132, 0
    %v176 = vsel %vm171, %v133, 0
    %v179 = vsel %vm171, %v134, 0
    %v182 = vsel %vm171, %v135, 0
    %184 = vmatprep.subr.mxu0 %v61
    %185 = vmatpush1.msra.mxu0 %v60
    %186 = vmatprep.subr.mxu0 %v65
    %187 = vmatpush1.msra.mxu0 %v64
    %188 = vmatprep.subr.mxu0 %v69
    %189 = vmatpush1.msra.mxu0 %v68
    %190 = vmatprep.subr.mxu0 %v73
    %191 = vmatpush1.msra.mxu0 %v72
    %192 = vmatprep.subr.mxu0 %v77
    %193 = vmatpush1.msra.mxu0 %v76
    %194 = vmatprep.subr.mxu0 %v81
    %195 = vmatpush1.msra.mxu0 %v80
    %196 = vmatprep.subr.mxu0 %v85
    %197 = vmatpush1.msra.mxu0 %v84
    %198 = vmatprep.subr.mxu0 %v89
    %199 = vmatpush1.msra.mxu0 %v88
    %200 = vmatprep.subr.mxu0 %v93
    %201 = vmatpush1.msra.mxu0 %v92
    %202 = vmatprep.subr.mxu0 %v97
    %203 = vmatpush1.msra.mxu0 %v96
    %204 = vmatprep.subr.mxu0 %v101
    %205 = vmatpush1.msra.mxu0 %v100
    %206 = vmatprep.subr.mxu0 %v105
    %207 = vmatpush1.msra.mxu0 %v104
    %208 = vmatprep.subr.mxu0 %v109
    %209 = vmatpush1.msra.mxu0 %v108
    %210 = vmatprep.subr.mxu0 %v113
    %211 = vmatpush1.msra.mxu0 %v112
    %212 = vmatprep.subr.mxu0 %v117
    %213 = vmatpush1.msra.mxu0 %v116
    %214 = vmatprep.subr.mxu0 %v121
    %215 = vmatpush1.msra.mxu0 %v120
    %216 = vmatprep.subr.mxu0 %v125
    %217 = vmatpush1.msra.mxu0 %v124
    %218 = vmatprep.subr.mxu0 %v129
    %219 = vmatpush1.msra.mxu0 %v128
    %220 = vmatprep.subr.mxu0 %v176
    %221 = vmatpush1.msra.mxu0 %v173
    %222 = vmatprep.subr.mxu0 0.0
    %223 = vmatpush1.msra.mxu0 0.0
    %224 = vmatprep.subr.mxu0 0.0
    %225 = vmatpush1.msra.mxu0 0.0
    %226 = vmatprep.subr.mxu0 0.0
    %227 = vmatpush1.msra.mxu0 0.0
    %228 = vmatprep.subr.mxu0 0.0
    %229 = vmatpush1.msra.mxu0 0.0
    %230 = vmatprep.subr.mxu0 0.0
    %231 = vmatpush1.msra.mxu0 0.0
    %232 = vmatprep.subr.mxu0 0.0
    %233 = vmatpush1.msra.mxu0 0.0
    %234 = vmatprep.subr.mxu0 0.0
    %235 = vmatpush1.msra.mxu0 0.0
    %236 = vmatprep.subr.mxu0 0.0
    %237 = vmatpush1.msra.mxu0 0.0
    %238 = vmatprep.subr.mxu0 0.0
    %239 = vmatpush1.msra.mxu0 0.0
    %240 = vmatprep.subr.mxu0 0.0
    %241 = vmatpush1.msra.mxu0 0.0
    %242 = vmatprep.subr.mxu0 0.0
    %243 = vmatpush1.msra.mxu0 0.0
    %244 = vmatprep.subr.mxu0 0.0
    %245 = vmatpush1.msra.mxu0 0.0
    %246 = vmatprep.subr.mxu0 0.0
    %247 = vmatpush1.msra.mxu0 0.0
    %248 = vmatprep.mubr.f32.mxu0 %v169
    %249 = vmatmul.mubr.f32.gmra.mrb[0].mxu0 %v165
    %v250 = vpop.f32.mrb[0].mxu0
    %v251 = vadd.f32 %v141, %v250
    %v252 = vpop.f32.mrb[0].mxu0
    %v253 = vadd.f32 %v145, %v252
    %254 = vdwg.mxu0
    %255 = vmatprep.subr.mxu0 %v63
    %256 = vmatpush1.msra.mxu0 %v62
    %257 = vmatprep.subr.mxu0 %v67
    %258 = vmatpush1.msra.mxu0 %v66
    %259 = vmatprep.subr.mxu0 %v71
    %260 = vmatpush1.msra.mxu0 %v70
    %261 = vmatprep.subr.mxu0 %v75
    %262 = vmatpush1.msra.mxu0 %v74
    %263 = vmatprep.subr.mxu0 %v79
    %264 = vmatpush1.msra.mxu0 %v78
    %265 = vmatprep.subr.mxu0 %v83
    %266 = vmatpush1.msra.mxu0 %v82
    %267 = vmatprep.subr.mxu0 %v87
    %268 = vmatpush1.msra.mxu0 %v86
    %269 = vmatprep.subr.mxu0 %v91
    %270 = vmatpush1.msra.mxu0 %v90
    %271 = vmatprep.subr.mxu0 %v95
    %272 = vmatpush1.msra.mxu0 %v94
    %273 = vmatprep.subr.mxu0 %v99
    %274 = vmatpush1.msra.mxu0 %v98
    %275 = vmatprep.subr.mxu0 %v103
    %276 = vmatpush1.msra.mxu0 %v102
    %277 = vmatprep.subr.mxu0 %v107
    %278 = vmatpush1.msra.mxu0 %v106
    %279 = vmatprep.subr.mxu0 %v111
    %280 = vmatpush1.msra.mxu0 %v110
    %281 = vmatprep.subr.mxu0 %v115
    %282 = vmatpush1.msra.mxu0 %v114
    %283 = vmatprep.subr.mxu0 %v119
    %284 = vmatpush1.msra.mxu0 %v118
    %285 = vmatprep.subr.mxu0 %v123
    %286 = vmatpush1.msra.mxu0 %v122
    %287 = vmatprep.subr.mxu0 %v127
    %288 = vmatpush1.msra.mxu0 %v126
    %289 = vmatprep.subr.mxu0 %v131
    %290 = vmatpush1.msra.mxu0 %v130
    %291 = vmatprep.subr.mxu0 %v182
    %292 = vmatpush1.msra.mxu0 %v179
    %293 = vmatprep.subr.mxu0 0.0
    %294 = vmatpush1.msra.mxu0 0.0
    %295 = vmatprep.subr.mxu0 0.0
    %296 = vmatpush1.msra.mxu0 0.0
    %297 = vmatprep.subr.mxu0 0.0
    %298 = vmatpush1.msra.mxu0 0.0
    %299 = vmatprep.subr.mxu0 0.0
    %300 = vmatpush1.msra.mxu0 0.0
    %301 = vmatprep.subr.mxu0 0.0
    %302 = vmatpush1.msra.mxu0 0.0
    %303 = vmatprep.subr.mxu0 0.0
    %304 = vmatpush1.msra.mxu0 0.0
    %305 = vmatprep.subr.mxu0 0.0
    %306 = vmatpush1.msra.mxu0 0.0
    %307 = vmatprep.subr.mxu0 0.0
    %308 = vmatpush1.msra.mxu0 0.0
    %309 = vmatprep.subr.mxu0 0.0
    %310 = vmatpush1.msra.mxu0 0.0
    %311 = vmatprep.subr.mxu0 0.0
    %312 = vmatpush1.msra.mxu0 0.0
    %313 = vmatprep.subr.mxu0 0.0
    %314 = vmatpush1.msra.mxu0 0.0
    %315 = vmatprep.subr.mxu0 0.0
    %316 = vmatpush1.msra.mxu0 0.0
    %317 = vmatprep.subr.mxu0 0.0
    %318 = vmatpush1.msra.mxu0 0.0
    %319 = vmatprep.mubr.f32.mxu0 %v169
    %320 = vmatmul.mubr.f32.gmra.mrb[0].mxu0 %v165
    %v321 = vpop.f32.mrb[0].mxu0
    %v322 = vadd.f32 %v149, %v321
    %v323 = vpop.f32.mrb[0].mxu0
    %v324 = vadd.f32 %v153, %v323
    %325 = vdwg.mxu0
    %v326 = vmax.f32 %v251, 0.0
    %v327 = vmax.f32 %v253, 0.0
    %v328 = vmax.f32 %v322, 0.0
    %v329 = vmax.f32 %v324, 0.0
    %v330 = vld [vmem:[#allocation6] sm:$0xff]
    %v331 = vld [vmem:[#allocation6 + $0x8] sm:$0xff]
    %v332 = vld [vmem:[#allocation6 + $0x10] sm:$0xff]
    %v333 = vld [vmem:[#allocation6 + $0x18] sm:$0xff]
    %v334 = vld [vmem:[#allocation6 + $0x20] sm:$0xff]
    %v335 = vld [vmem:[#allocation6 + $0x28] sm:$0xff]
    %v336 = vld [vmem:[#allocation6 + $0x30] sm:$0xff]
    %v337 = vld [vmem:[#allocation6 + $0x38] sm:$0xff]
    %v338 = vld [vmem:[#allocation6 + $0x40] sm:$0xff]
    %v339 = vld [vmem:[#allocation6 + $0x48] sm:$0xff]
    %v340 = vld [vmem:[#allocation6 + $0x50] sm:$0xff]
    %v341 = vld [vmem:[#allocation6 + $0x58] sm:$0xff]
    %v342 = vld [vmem:[#allocation6 + $0x60] sm:$0xff]
    %v343 = vld [vmem:[#allocation6 + $0x68] sm:$0xff]
    %v344 = vld [vmem:[#allocation6 + $0x70] sm:$0xff]
    %v345 = vld [vmem:[#allocation6 + $0x78] sm:$0xff]
    %v346 = vld [vmem:[#allocation6 + $0x80] sm:$0xff]
    %v347 = vld [vmem:[#allocation6 + $0x88] sm:$0xff]
    %v348 = vld [vmem:[#allocation6 + $0x90] sm:$0xff]
    %v349 = vld [vmem:[#allocation6 + $0x98] sm:$0xff]
    %v350 = vld [vmem:[#allocation6 + $0xa0] sm:$0xff]
    %v351 = vld [vmem:[#allocation6 + $0xa8] sm:$0xff]
    %v352 = vld [vmem:[#allocation6 + $0xb0] sm:$0xff]
    %v353 = vld [vmem:[#allocation6 + $0xb8] sm:$0xff]
    %v354 = vld [vmem:[#allocation6 + $0xc0] sm:$0xff]
    %v355 = vld [vmem:[#allocation6 + $0xc8] sm:$0xff]
    %v356 = vld [vmem:[#allocation6 + $0xd0] sm:$0xff]
    %v357 = vld [vmem:[#allocation6 + $0xd8] sm:$0xff]
    %v358 = vld [vmem:[#allocation6 + $0xe0] sm:$0xff]
    %v359 = vld [vmem:[#allocation6 + $0xe8] sm:$0xff]
    %v360 = vld [vmem:[#allocation6 + $0xf0] sm:$0xff]
    %v361 = vld [vmem:[#allocation6 + $0xf8] sm:$0xff]
    %v362 = vld [vmem:[#allocation6 + $0x100] sm:$0xff]
    %v363 = vld [vmem:[#allocation6 + $0x108] sm:$0xff]
    %v364 = vld [vmem:[#allocation6 + $0x110] sm:$0xff]
    %v365 = vld [vmem:[#allocation6 + $0x118] sm:$0xff]
    %v366 = vld [vmem:[#allocation6 + $0x120] sm:$0xff]
    %v367 = vld [vmem:[#allocation6 + $0x128] sm:$0xff]
    %v368 = vld [vmem:[#allocation6 + $0x130] sm:$0xff]
    %v369 = vld [vmem:[#allocation6 + $0x138] sm:$0xff]
    %v370 = vld [vmem:[#allocation6 + $0x140] sm:$0xff]
    %v371 = vld [vmem:[#allocation6 + $0x148] sm:$0xff]
    %v372 = vld [vmem:[#allocation6 + $0x150] sm:$0xff]
    %v373 = vld [vmem:[#allocation6 + $0x158] sm:$0xff]
    %v374 = vld [vmem:[#allocation6 + $0x160] sm:$0xff]
    %v375 = vld [vmem:[#allocation6 + $0x168] sm:$0xff]
    %v376 = vld [vmem:[#allocation6 + $0x170] sm:$0xff]
    %v377 = vld [vmem:[#allocation6 + $0x178] sm:$0xff]
    %v378 = vld [vmem:[#allocation6 + $0x180] sm:$0xff]
    %v379 = vld [vmem:[#allocation6 + $0x188] sm:$0xff]
    %v380 = vld [vmem:[#allocation6 + $0x190] sm:$0xff]
    %v381 = vld [vmem:[#allocation6 + $0x198] sm:$0xff]
    %v382 = vld [vmem:[#allocation6 + $0x1a0] sm:$0xff]
    %v383 = vld [vmem:[#allocation6 + $0x1a8] sm:$0xff]
    %v384 = vld [vmem:[#allocation6 + $0x1b0] sm:$0xff]
    %v385 = vld [vmem:[#allocation6 + $0x1b8] sm:$0xff]
    %v386 = vld [vmem:[#allocation6 + $0x1c0] sm:$0xff]
    %v387 = vld [vmem:[#allocation6 + $0x1c8] sm:$0xff]
    %v388 = vld [vmem:[#allocation6 + $0x1d0] sm:$0xff]
    %v389 = vld [vmem:[#allocation6 + $0x1d8] sm:$0xff]
    %v390 = vld [vmem:[#allocation6 + $0x1e0] sm:$0xff]
    %v391 = vld [vmem:[#allocation6 + $0x1e8] sm:$0xff]
    %v392 = vld [vmem:[#allocation6 + $0x1f0] sm:$0xff]
    %v393 = vld [vmem:[#allocation6 + $0x1f8] sm:$0xff]
    %v394 = vld [vmem:[%s4] sm:$0x1]
    %v396 = vlaneseq
    %v397 = vshrl.u32 %v396, 7
    %v398 = vsub.s32 0, %v397
    %v399 = vrot.slane %v394, %v398
    %401 = vmatprep.subr.mxu0 0.0
    %402 = vmatpush1.msra.mxu0 %v330
    %403 = vmatprep.subr.mxu0 0.0
    %404 = vmatpush1.msra.mxu0 %v331
    %405 = vmatprep.subr.mxu0 0.0
    %406 = vmatpush1.msra.mxu0 %v332
    %407 = vmatprep.subr.mxu0 0.0
    %408 = vmatpush1.msra.mxu0 %v333
    %409 = vmatprep.subr.mxu0 0.0
    %410 = vmatpush1.msra.mxu0 %v334
    %411 = vmatprep.subr.mxu0 0.0
    %412 = vmatpush1.msra.mxu0 %v335
    %413 = vmatprep.subr.mxu0 0.0
    %414 = vmatpush1.msra.mxu0 %v336
    %415 = vmatprep.subr.mxu0 0.0
    %416 = vmatpush1.msra.mxu0 %v337
    %417 = vmatprep.subr.mxu0 0.0
    %418 = vmatpush1.msra.mxu0 %v338
    %419 = vmatprep.subr.mxu0 0.0
    %420 = vmatpush1.msra.mxu0 %v339
    %421 = vmatprep.subr.mxu0 0.0
    %422 = vmatpush1.msra.mxu0 %v340
    %423 = vmatprep.subr.mxu0 0.0
    %424 = vmatpush1.msra.mxu0 %v341
    %425 = vmatprep.subr.mxu0 0.0
    %426 = vmatpush1.msra.mxu0 %v342
    %427 = vmatprep.subr.mxu0 0.0
    %428 = vmatpush1.msra.mxu0 %v343
    %429 = vmatprep.subr.mxu0 0.0
    %430 = vmatpush1.msra.mxu0 %v344
    %431 = vmatprep.subr.mxu0 0.0
    %432 = vmatpush1.msra.mxu0 %v345
    %433 = vmatprep.subr.mxu0 0.0
    %434 = vmatpush1.msra.mxu0 %v346
    %435 = vmatprep.subr.mxu0 0.0
    %436 = vmatpush1.msra.mxu0 %v347
    %437 = vmatprep.subr.mxu0 0.0
    %438 = vmatpush1.msra.mxu0 %v348
    %439 = vmatprep.subr.mxu0 0.0
    %440 = vmatpush1.msra.mxu0 %v349
    %441 = vmatprep.subr.mxu0 0.0
    %442 = vmatpush1.msra.mxu0 %v350
    %443 = vmatprep.subr.mxu0 0.0
    %444 = vmatpush1.msra.mxu0 %v351
    %445 = vmatprep.subr.mxu0 0.0
    %446 = vmatpush1.msra.mxu0 %v352
    %447 = vmatprep.subr.mxu0 0.0
    %448 = vmatpush1.msra.mxu0 %v353
    %449 = vmatprep.subr.mxu0 0.0
    %450 = vmatpush1.msra.mxu0 %v354
    %451 = vmatprep.subr.mxu0 0.0
    %452 = vmatpush1.msra.mxu0 %v355
    %453 = vmatprep.subr.mxu0 0.0
    %454 = vmatpush1.msra.mxu0 %v356
    %455 = vmatprep.subr.mxu0 0.0
    %456 = vmatpush1.msra.mxu0 %v357
    %457 = vmatprep.subr.mxu0 0.0
    %458 = vmatpush1.msra.mxu0 %v358
    %459 = vmatprep.subr.mxu0 0.0
    %460 = vmatpush1.msra.mxu0 %v359
    %461 = vmatprep.subr.mxu0 0.0
    %462 = vmatpush1.msra.mxu0 %v360
    %463 = vmatprep.subr.mxu0 0.0
    %464 = vmatpush1.msra.mxu0 %v361
    %465 = vmatprep.mubr.f32.mxu0 %v327
    %466 = vmatmul.mubr.f32.gmra.mrb[0].mxu0 %v326
    %v467 = vpop.f32.mrb[0].mxu0
    %v468 = vadd.f32 %v399, %v467
    %v469 = vpop.f32.mrb[0].mxu0
    %470 = vdwg.mxu0
    %471 = vmatprep.subr.mxu0 0.0
    %472 = vmatpush1.msra.mxu0 %v362
    %473 = vmatprep.subr.mxu0 0.0
    %474 = vmatpush1.msra.mxu0 %v363
    %475 = vmatprep.subr.mxu0 0.0
    %476 = vmatpush1.msra.mxu0 %v364
    %477 = vmatprep.subr.mxu0 0.0
    %478 = vmatpush1.msra.mxu0 %v365
    %479 = vmatprep.subr.mxu0 0.0
    %480 = vmatpush1.msra.mxu0 %v366
    %481 = vmatprep.subr.mxu0 0.0
    %482 = vmatpush1.msra.mxu0 %v367
    %483 = vmatprep.subr.mxu0 0.0
    %484 = vmatpush1.msra.mxu0 %v368
    %485 = vmatprep.subr.mxu0 0.0
    %486 = vmatpush1.msra.mxu0 %v369
    %487 = vmatprep.subr.mxu0 0.0
    %488 = vmatpush1.msra.mxu0 %v370
    %489 = vmatprep.subr.mxu0 0.0
    %490 = vmatpush1.msra.mxu0 %v371
    %491 = vmatprep.subr.mxu0 0.0
    %492 = vmatpush1.msra.mxu0 %v372
    %493 = vmatprep.subr.mxu0 0.0
    %494 = vmatpush1.msra.mxu0 %v373
    %495 = vmatprep.subr.mxu0 0.0
    %496 = vmatpush1.msra.mxu0 %v374
    %497 = vmatprep.subr.mxu0 0.0
    %498 = vmatpush1.msra.mxu0 %v375
    %499 = vmatprep.subr.mxu0 0.0
    %500 = vmatpush1.msra.mxu0 %v376
    %501 = vmatprep.subr.mxu0 0.0
    %502 = vmatpush1.msra.mxu0 %v377
    %503 = vmatprep.subr.mxu0 0.0
    %504 = vmatpush1.msra.mxu0 %v378
    %505 = vmatprep.subr.mxu0 0.0
    %506 = vmatpush1.msra.mxu0 %v379
    %507 = vmatprep.subr.mxu0 0.0
    %508 = vmatpush1.msra.mxu0 %v380
    %509 = vmatprep.subr.mxu0 0.0
    %510 = vmatpush1.msra.mxu0 %v381
    %511 = vmatprep.subr.mxu0 0.0
    %512 = vmatpush1.msra.mxu0 %v382
    %513 = vmatprep.subr.mxu0 0.0
    %514 = vmatpush1.msra.mxu0 %v383
    %515 = vmatprep.subr.mxu0 0.0
    %516 = vmatpush1.msra.mxu0 %v384
    %517 = vmatprep.subr.mxu0 0.0
    %518 = vmatpush1.msra.mxu0 %v385
    %519 = vmatprep.subr.mxu0 0.0
    %520 = vmatpush1.msra.mxu0 %v386
    %521 = vmatprep.subr.mxu0 0.0
    %522 = vmatpush1.msra.mxu0 %v387
    %523 = vmatprep.subr.mxu0 0.0
    %524 = vmatpush1.msra.mxu0 %v388
    %525 = vmatprep.subr.mxu0 0.0
    %526 = vmatpush1.msra.mxu0 %v389
    %527 = vmatprep.subr.mxu0 0.0
    %528 = vmatpush1.msra.mxu0 %v390
    %529 = vmatprep.subr.mxu0 0.0
    %530 = vmatpush1.msra.mxu0 %v391
    %531 = vmatprep.subr.mxu0 0.0
    %532 = vmatpush1.msra.mxu0 %v392
    %533 = vmatprep.subr.mxu0 0.0
    %534 = vmatpush1.msra.mxu0 %v393
    %535 = vmatprep.mubr.f32.mxu0 %v329
    %536 = vmatmul.mubr.f32.gmra.mrb[0].mxu0 %v328
    %v537 = vpop.f32.mrb[0].mxu0
    %v538 = vadd.f32 %v468, %v537
    %v539 = vpop.f32.mrb[0].mxu0
    %540 = vdwg.mxu0
    %v541 = vlaneseq
    %v542 = vand.u32 %v541, 127
    %vm543 = vcmp.ge.s32.totalorder %v542, 1
    %vm544 = vcmp.lt.s32.totalorder %v542, 9
    %vm545 = vmand %vm543, %vm544
    %v546 = vsel %vm545, %v538, 0.0
    %vm547 = vcmask 1041408
    %v548 = vsel %vm547, %v546, 0.0
    %549 = vadd.xlane.f32.xlu0 %v548
    %v550 = vpop.xlane.xlu0 %549
    %v551 = vrot.slane %v550, 4
    %v552 = vadd.f32 %v550, %v551
    %v553 = vrot.slane %v552, 2
    %v554 = vadd.f32 %v552, %v553
    %v555 = vrot.slane %v554, 1
    %v556 = vadd.f32 %v554, %v555
    %s557 = vtos %v556
    %s558 = smul.f32 %s557, 0.0625
    %560 = vset.pattern.permute.xlu0 0
    %561 = vperm.xlu0 %560, %v538
    %v562 = vpop.permute.xlu0 %561
    %v564 = vadd.f32 %v538, %v562
    %v565 = vstv %s558
    %v566 = vsub.f32 %v564, %v565
    %567 = vst [vmem:[%s5] sm:$0x3] %v566
    // Predicated region
    $region34: #{orb_ddqn_forward.1} parent=1 // pred_check
      _
    $region35: #{orb_ddqn_forward.1} parent=1 // pred_check_branch
      %569 = sbr.rel (0) target = $region37
    $region36: #{orb_ddqn_forward.1} parent=1 // pred_region
      _
    $region37: #{orb_ddqn_forward.1} parent=1 // pred_fallthru
      _
    // Predicated region
    $region38: #{orb_ddqn_forward.1} parent=1 // pred_check
      _
    $region39: #{orb_ddqn_forward.1} parent=1 // pred_check_branch
      %571 = sbr.rel (0) target = $region41
    $region40: #{orb_ddqn_forward.1} parent=1 // pred_region
      _
    $region41: #{orb_ddqn_forward.1} parent=1 // pred_fallthru
      _
    %572 = vsyncpa [#allocation3], 1
    %573 = vsyncpa [#allocation5], 1

</llo_original>
